<compile_context>
chip_gen: v7x
topology: tpu7x:2x2x1
jax: 0.10.0
libtpu: 0.0.40
codegen_flags: <defaults>
</compile_context>

<pallas_src>
import functools

import jax
import jax.numpy as jnp
from jax import lax
from jax.experimental import pallas as pl
from jax.experimental.pallas import tpu as pltpu


# ---------------------------------------------------------------------------
# pltpu.roll sign-convention probe (run once; guards against silent direction
# mistakes while keeping the robust XLU rotate lowering path for shifts).
# ---------------------------------------------------------------------------
_ROLL_JNP_LIKE = None


def _roll_probe_kernel(x_ref, o_ref):
    o_ref[...] = pltpu.roll(x_ref[...], 1, 1)


def _roll_is_jnp_like():
    """True iff pltpu.roll(x, s, a) behaves like jnp.roll(x, s, a)."""
    global _ROLL_JNP_LIKE
    if _ROLL_JNP_LIKE is None:
        x = jnp.broadcast_to(jnp.arange(128, dtype=jnp.float32), (8, 128))
        y = pl.pallas_call(
            _roll_probe_kernel,
            out_shape=jax.ShapeDtypeStruct((8, 128), jnp.float32))(x)
        _ROLL_JNP_LIKE = bool(y[0, 0] == 127.0)
    return _ROLL_JNP_LIKE


# ---------------------------------------------------------------------------
# Fused forward kernel: whole batch, lane-dense (rows, H*W) tiles in VMEM.
# ---------------------------------------------------------------------------
def _iaicd_fused_kernel(guid_ref, lidar_ref, illu_ref, convw_ref, kdiff_ref,
                        tw_ref, tb_ref, rgbdw_ref, rgbdb_ref,
                        qkvw_ref, qkvb_ref,
                        out_ref, *, B, C, H, W, theta, gamma, eps,
                        roll_jnp_like):
    HW = H * W
    taps = [(dh, dw) for dh in (-1, 0, 1) for dw in (-1, 0, 1)]

    # ---------------- helpers on lane-dense (rows, H*W) tiles ----------------
    def lane_roll(x, k):
        # result[:, p] = x[:, (p + k) % HW]  (static k)
        k = k % HW
        if k == 0:
            return x
        shift = (-k) % HW if roll_jnp_like else k
        return pltpu.roll(x, shift, 1)

    _rc_cache = {}

    def rowcol(rows):
        if rows not in _rc_cache:
            p = lax.broadcasted_iota(jnp.int32, (rows, HW), 1)
            _rc_cache[rows] = (p // W, p % W)
        return _rc_cache[rows]

    def shift_zero(x, dh, dw):
        # x[h+dh, w+dw] with zeros outside the HxW grid (zero-padded conv tap).
        if dh == 0 and dw == 0:
            return x
        h, w = rowcol(x.shape[0])
        y = lane_roll(x, dh * W + dw)
        valid = None
        if dh == -1:
            valid = h >= 1
        elif dh == 1:
            valid = h <= H - 2
        if dw == -1:
            c = w >= 1
            valid = c if valid is None else jnp.logical_and(valid, c)
        elif dw == 1:
            c = w <= W - 2
            valid = c if valid is None else jnp.logical_and(valid, c)
        return jnp.where(valid, y, 0.0)

    def reflect_shift(x, dh, dw):
        # x[reflect(h+dh), reflect(w+dw)], reflect(-1)=1 / reflect(N)=N-2,
        # matching the ReflectionPad2d-based feature_padding().
        h, w = rowcol(x.shape[0])
        y = x
        if dw != 0:
            fwd = lane_roll(y, dw)
            bwd = lane_roll(y, -dw)
            edge = (w == 0) if dw == -1 else (w == W - 1)
            y = jnp.where(edge, bwd, fwd)
        if dh != 0:
            fwd = lane_roll(y, dh * W)
            bwd = lane_roll(y, -dh * W)
            edge = (h == 0) if dh == -1 else (h == H - 1)
            y = jnp.where(edge, bwd, fwd)
        return y

    def conv3x3(x, w_flat_ref):
        # zero-padded 3x3 conv as ONE matmul:
        #   stack the 9 shifted taps along the channel axis (tap-major) and
        #   contract against the (Cout, 9*Cin) tap-major weight.
        stacked = jnp.concatenate(
            [shift_zero(x, dh, dw) for (dh, dw) in taps], axis=0)
        return jnp.dot(w_flat_ref[...], stacked,
                       preferred_element_type=jnp.float32)

    # small resident parameter tiles
    kdiff = kdiff_ref[...]          # (C, C)
    tw = tw_ref[...]                # (9 cout, 9 taps)
    tbias = tb_ref[...]             # (9, 1)
    rgbdb = rgbdb_ref[...]          # (C, 1)
    qkvw = qkvw_ref[...]            # (3C, C)
    qkvb = qkvb_ref[...]            # (3C, 1)

    n_stat = float(B * HW)

    # ---- illumination gates: transfer conv(1->9) + BN + ReLU -> GAP -> L1 ----
    t_pre = []
    for b in range(B):
        ib = illu_ref[b]                                     # (1, HW)
        acc = None
        for t, (dh, dw) in enumerate(taps):
            term = tw[:, t:t + 1] * shift_zero(ib, dh, dw)   # (9,1)*(1,HW)
            acc = term if acc is None else acc + term
        t_pre.append(acc + tbias)                            # (9, HW)
    s1 = sum(jnp.sum(tp, axis=1, keepdims=True) for tp in t_pre)
    s2 = sum(jnp.sum(tp * tp, axis=1, keepdims=True) for tp in t_pre)
    mean_t = s1 / n_stat
    var_t = jnp.maximum(s2 / n_stat - mean_t * mean_t, 0.0)
    inv_t = lax.rsqrt(var_t + eps)
    gates = []
    for b in range(B):
        act = jnp.maximum((t_pre[b] - mean_t) * inv_t, 0.0)  # BN (id affine)+ReLU
        gap = jnp.mean(act, axis=1, keepdims=True)           # (9, 1)
        l1 = jnp.sum(jnp.abs(gap), axis=0, keepdims=True) + 1e-8
        gates.append(gap / l1)                               # (9, 1)

    # ---- main branch: conv(guidance), gated differential, conv_rgbd (pre-BN) --
    y_pre = []
    for b in range(B):
        on = conv3x3(guid_ref[b], convw_ref)                 # out_normal (C, HW)
        # kernel_diff (1x1) commutes with the spatial shifts -> apply it once.
        d = jnp.dot(kdiff, on, preferred_element_type=jnp.float32)
        gb = gates[b]
        diff = None
        for t, (dh, dw) in enumerate(taps):
            term = gb[t:t + 1, :] * reflect_shift(d, dh, dw)
            diff = term if diff is None else diff + term
        new_normal = on - theta * diff
        cat = jnp.concatenate([new_normal, lidar_ref[b]], axis=0)   # (2C, HW)
        y_pre.append(conv3x3(cat, rgbdw_ref) + rgbdb)               # (C, HW)

    # BatchNorm statistics over (B, H*W) per channel, single pass (sum / sumsq)
    s1 = sum(jnp.sum(yp, axis=1, keepdims=True) for yp in y_pre)
    s2 = sum(jnp.sum(yp * yp, axis=1, keepdims=True) for yp in y_pre)
    mean_y = s1 / n_stat
    var_y = jnp.maximum(s2 / n_stat - mean_y * mean_y, 0.0)
    inv_y = lax.rsqrt(var_y + eps)

    # ---- PAM averaging projectors generated in-kernel (no HBM traffic) -------
    # a_w[p, p'] = [row(p)==row(p')]/W  (AvgPool over width, broadcast back)
    # a_h[p, p'] = [col(p)==col(p')]/H  (AvgPool over height, broadcast back)
    pi = lax.broadcasted_iota(jnp.int32, (HW, HW), 0)
    pj = lax.broadcasted_iota(jnp.int32, (HW, HW), 1)
    a_w = jnp.where(pi // W == pj // W, 1.0 / W, 0.0)
    a_h = jnp.where(pi % W == pj % W, 1.0 / H, 0.0)

    # ---- BN+ReLU epilogue + PAM position attention (fused q/k/v matmul) ------
    for b in range(B):
        y = jnp.maximum((y_pre[b] - mean_y) * inv_y, 0.0)    # (C, HW)
        pqkv = jnp.dot(qkvw, y, preferred_element_type=jnp.float32) + qkvb
        pq = pqkv[0:C]
        pk = pqkv[C:2 * C]
        pv = pqkv[2 * C:3 * C]
        qe = jnp.dot(pq, a_w, preferred_element_type=jnp.float32)
        ke = jnp.dot(pk, a_h, preferred_element_type=jnp.float32)
        energy = qe * ke                                     # (C, HW)
        m = jnp.max(energy, axis=1, keepdims=True)
        e = jnp.exp(energy - m)
        denom = jnp.sum(e, axis=1, keepdims=True)
        att = e * pl.reciprocal(denom, approx=True)          # softmax over H*W
        out_ref[b] = gamma * (pv * att) + y                  # lane-dense store


# ---------------------------------------------------------------------------
# Wrapper: parameter reshaping (tap-major weights, fused q/k/v) + pallas_call
# ---------------------------------------------------------------------------
def init_params(key, c):
    ks = jax.random.split(key, 8)
    w = lambda k, shape: 0.1 * jax.random.normal(k, shape, jnp.float32)
    return {
        "conv_w": w(ks[0], (c, c, 3, 3)),          # self.conv (bias=False)
        "transfer_w": w(ks[1], (9, 1, 3, 3)),      # transfer conv (Resolution=1)
        "transfer_b": w(ks[2], (9,)),
        "rgbd_w": w(ks[3], (c, 2 * c, 3, 3)),      # conv_rgbd conv
        "rgbd_b": w(ks[4], (c,)),
        "q_w": w(ks[5], (c, c)), "q_b": jnp.zeros((c,), jnp.float32),
        "k_w": w(ks[6], (c, c)), "k_b": jnp.zeros((c,), jnp.float32),
        "v_w": w(ks[7], (c, c)), "v_b": jnp.zeros((c,), jnp.float32),
        # PyTorch initializes gamma / theta to 0; nonzero deterministic values
        # are used here so both branches actually contribute in the test.
        "gamma": 0.25,
        "theta": 0.3,
    }


def my_iaicd_forward(lidar, guidance, illu, params, eps=1e-5):
    B, C, H, W = guidance.shape
    HW = H * W
    f32 = jnp.float32

    # lane-dense (B, C, H*W) activation layout
    guid_f = guidance.reshape(B, C, HW).astype(f32)
    lidar_f = lidar.reshape(B, C, HW).astype(f32)
    illu_f = illu.reshape(B, 1, HW).astype(f32)

    conv_w = params["conv_w"].astype(f32)
    # tap-major flat weight: convw_flat[co, (kh*3+kw)*Cin + ci] = w[co, ci, kh, kw]
    convw_flat = conv_w.transpose(0, 2, 3, 1).reshape(C, 9 * C)
    kdiff = conv_w.sum(axis=(2, 3))                           # (Cout, Cin)

    tw = params["transfer_w"].astype(f32).reshape(9, 9)       # (Cout, tap)
    tb = params["transfer_b"].astype(f32).reshape(9, 1)

    rgbd_w = params["rgbd_w"].astype(f32)
    rgbdw_flat = rgbd_w.transpose(0, 2, 3, 1).reshape(C, 9 * 2 * C)
    rgbdb = params["rgbd_b"].astype(f32).reshape(C, 1)

    qkv_w = jnp.concatenate(
        [params["q_w"], params["k_w"], params["v_w"]], axis=0).astype(f32)
    qkv_b = jnp.concatenate(
        [params["q_b"], params["k_b"], params["v_b"]],
        axis=0).astype(f32).reshape(3 * C, 1)

    kernel = functools.partial(
        _iaicd_fused_kernel, B=B, C=C, H=H, W=W,
        theta=float(params["theta"]), gamma=float(params["gamma"]), eps=eps,
        roll_jnp_like=_roll_is_jnp_like())

    out = pl.pallas_call(
        kernel,
        out_shape=jax.ShapeDtypeStruct((B, C, HW), f32),
        compiler_params=pltpu.CompilerParams(
            vmem_limit_bytes=32 * 1024 * 1024),
    )(guid_f, lidar_f, illu_f, convw_flat, kdiff, tw, tb,
      rgbdw_flat, rgbdb, qkv_w, qkv_b)
    return out.reshape(B, C, H, W)


if __name__ == "__main__":
    key = jax.random.PRNGKey(0)
    k_lidar, k_guid, k_illu, k_par = jax.random.split(key, 4)

    B, C, H, W = 2, 8, 16, 16          # in_channels == out_channels == 8
    lidar = jax.random.normal(k_lidar, (B, C, H, W), jnp.float32)
    guidance = jax.random.normal(k_guid, (B, C, H, W), jnp.float32)
    illu = jax.random.normal(k_illu, (B, 1, H, W), jnp.float32)

    params = init_params(k_par, C)

    out = my_iaicd_forward(lidar, guidance, illu, params)
    out = jax.block_until_ready(out)
    assert out.shape == (B, C, H, W)
    assert bool(jnp.all(jnp.isfinite(out)))
    print("KERNEL_OK")
</pallas_src>

<mosaic_0001>
module attributes {stable_mosaic.version = 11 : i64} {
  func.func @_roll_probe_kernel(%arg0: memref<8x128xf32, #tpu.memory_space<vmem>>, %arg1: memref<8x128xf32, #tpu.memory_space<vmem>>) attributes {dimension_semantics = [], scalar_prefetch = 0 : i64, scratch_operands = 0 : i64, tpu.core_type = #tpu.core_type<tc>} {
    %c0 = arith.constant 0 : index
    %c0_0 = arith.constant 0 : index
    %0 = vector.load %arg0[%c0, %c0_0] : memref<8x128xf32, #tpu.memory_space<vmem>>, vector<8x128xf32>
    %c1_i32 = arith.constant 1 : i32
    %1 = tpu.dynamic_rotate %0 by %c1_i32 dim 1 : vector<8x128xf32>, i32 -> vector<8x128xf32>
    %c0_1 = arith.constant 0 : index
    %c0_2 = arith.constant 0 : index
    %2 = vector.load %arg1[%c0_1, %c0_2] : memref<8x128xf32, #tpu.memory_space<vmem>>, vector<8x128xf32>
    tpu.vector_store %arg1[%c0_1, %c0_2], %1 {strides = array<i32>} : memref<8x128xf32, #tpu.memory_space<vmem>>, vector<8x128xf32>,
    return
  }
}

</mosaic_0001>

<llo_original>
// kernel: tpu_custom_call.1
$region0: #{tpu_custom_call.1}
  #allocation0 [shape = 'u32[]', space=smem, size = 0x4, offset = 0x4, fixed_abs, tag = 'smem constant byte address 0x4 - core index']
  #allocation1 [shape = 'u32[144,128]{1,0:T(1,128)}', space=vmem, size = 0x12000, scoped, tag = 'internal scratch']
  %s0 = inlined_call_operand.hbm [shape: f32[8,128], index: 0, kind: input, shape index: {}]
  %s1 = inlined_call_operand.hbm [shape: f32[8,128], index: 1, kind: output, shape index: {}]
  %s2 = sld [smem:[#allocation0]]
  $region18: #{tpu_custom_call.1} parent=0
    _
  %s4 = ssub.s32 1, %s2
  %s5 = scalar_select 0, %s4, %s2
  $region1: #{tpu_custom_call.1} parent=0
    #allocation2 [shape = 'u8[4096]{0}', space=vmem, size = 0x1000, scoped, tag = 'input window, operand 0, single buffered']
    #allocation3 [shape = 's32[1]{0}', space=sflag, size = 0x4, scoped, tag = 'scoped memory for tpu_custom_call.1']
    #allocation4 [shape = 's32[1]{0}', space=sflag, size = 0x4, scoped, tag = 'scoped memory for tpu_custom_call.1']
    #allocation5 [shape = 'u8[4096]{0}', space=vmem, size = 0x1000, scoped, tag = 'output window, operand 0, single buffered']
    %6 = vsyncpa [#allocation3], 0
    %7 = vsyncpa [#allocation4], 0
    // Predicated region
    $region2: #{tpu_custom_call.1} parent=1 // pred_check
      _
    $region3: #{tpu_custom_call.1} parent=1 // pred_check_branch
      %9 = sbr.rel (0) target = $region5
    $region4: #{tpu_custom_call.1} parent=1 // pred_region
      %s11 = ssub.s32 128, 128
      %12 = vsyncadd [#allocation3], %s11
      %s14 = sshll.u32 [#allocation2], 4
      %s15 = int_to_ptr.vmem [resolvable:$true] %s14
      %17 = dma.hbm_to_vmem [thread:$0]  %s0, 128, %s15, [#allocation3]
    $region5: #{tpu_custom_call.1} parent=1 // pred_fallthru
      _
    // Predicated region
    $region6: #{tpu_custom_call.1} parent=1 // pred_check
      _
    $region7: #{tpu_custom_call.1} parent=1 // pred_check_branch
      %19 = sbr.rel (0) target = $region9
    $region8: #{tpu_custom_call.1} parent=1 // pred_region
      %20 = dma.done [#allocation3], 128
    $region9: #{tpu_custom_call.1} parent=1 // pred_fallthru
      _
    %v21 = vld [vmem:[#allocation2] sm:$0xff]
    %22 = vrot.lane.b32.xlu0 %v21, 1
    %v23 = vpop.permute.xlu0 %22
    %24 = vst [vmem:[#allocation5] sm:$0xff] %v23
    // Predicated region
    $region10: #{tpu_custom_call.1} parent=1 // pred_check
      _
    $region11: #{tpu_custom_call.1} parent=1 // pred_check_branch
      %26 = sbr.rel (0) target = $region13
    $region12: #{tpu_custom_call.1} parent=1 // pred_region
      %s28 = ssub.s32 128, 128
      %29 = vsyncadd [#allocation4], %s28
      %s31 = sshll.u32 [#allocation5], 4
      %s32 = int_to_ptr.vmem [resolvable:$true] %s31
      %34 = dma.vmem_to_hbm [thread:$0]  %s32, 128, %s1, [#allocation4]
    $region13: #{tpu_custom_call.1} parent=1 // pred_fallthru
      _
    // Predicated region
    $region14: #{tpu_custom_call.1} parent=1 // pred_check
      _
    $region15: #{tpu_custom_call.1} parent=1 // pred_check_branch
      %36 = sbr.rel (0) target = $region17
    $region16: #{tpu_custom_call.1} parent=1 // pred_region
      %37 = dma.done [#allocation4], 128
    $region17: #{tpu_custom_call.1} parent=1 // pred_fallthru
      _
    %38 = vsyncpa [#allocation3], 1
    %39 = vsyncpa [#allocation4], 1

</llo_original>
